<compile_context>
chip_gen: v6e
topology: v6e:2x2x1
jax: 0.10.0
libtpu: 0.0.40
codegen_flags: <defaults>
</compile_context>

<pallas_src>
import jax
import jax.numpy as jnp
from jax.experimental import pallas as pl
from jax.experimental.pallas import tpu as pltpu

# ---- small, forward-consistent shapes ----
B = 2            # batch
L = 16           # sequence length (char-trigram positions)
C_IN = 32        # char-trigram feature dim (Conv1d in channels)
K = 3            # Conv1d window
H = 64           # Conv1d out channels
OUT_SIZE = (32,) # CDSSM out_size; sentence vectors have dim OUT_SIZE[-1]
D = OUT_SIZE[-1]
L_OUT = L - K + 1
W_PAD = H        # lane width of the packed parameter buffers (>= D)

# packed weight-buffer row offsets (w_packed: (2*K*C_IN + 2*H, W_PAD))
CW_A = 0                 # conv weight, tower A: rows [0, K*C_IN)
CW_B = K * C_IN          # conv weight, tower B
FW_A = 2 * K * C_IN      # fc weight, tower A (cols >= D are zero)
FW_B = 2 * K * C_IN + H  # fc weight, tower B
# packed vector-buffer rows (v_packed: (8, W_PAD))
CB_A, CB_B, FB_A, FB_B, COMB_W, COMB_B = 0, 1, 2, 3, 4, 5


def matcher_kernel(xa_ref, xb_ref, w_ref, v_ref, out_ref):
    """Whole forward pass in VMEM: im2col conv matmul, masked max-pool,
    dense layer, elementwise product, lane-reduce combination + sigmoid."""
    v = v_ref[...]                                     # (8, W_PAD) — one small load

    def tower(x_ref, cw_off, fw_off, cb_row, fb_row):
        x = x_ref[...]                                 # (B*L, C_IN), batch folded into rows
        # im2col: column block k holds x shifted up by k rows.  Wrapped rows
        # (windows running off a sentence end) are masked before pooling.
        shifted = [x] + [jnp.concatenate([x[k:, :], x[:k, :]], axis=0)
                         for k in range(1, K)]
        xi = jnp.concatenate(shifted, axis=1)          # (B*L, K*C_IN)
        conv = jnp.tanh(
            jnp.dot(xi, w_ref[cw_off:cw_off + K * C_IN, :],
                    preferred_element_type=jnp.float32)
            + v[cb_row:cb_row + 1, :])                 # (B*L, H)
        conv = conv.reshape(B, L, H)                   # aligned split (L % 8 == 0)
        t = jax.lax.broadcasted_iota(jnp.int32, (B, L, H), 1)
        conv = jnp.where(t < L_OUT, conv, -2.0)        # tanh in [-1,1]; -2 never wins the max
        pooled = jnp.max(conv, axis=1)                 # (B, H) global max-pool over time
        vec = jnp.tanh(
            jnp.dot(pooled, w_ref[fw_off:fw_off + H, :],
                    preferred_element_type=jnp.float32)
            + v[fb_row:fb_row + 1, :])                 # (B, W_PAD); cols >= D stay 0
        return vec

    va = tower(xa_ref, CW_A, FW_A, CB_A, FB_A)
    vb = tower(xb_ref, CW_B, FW_B, CB_B, FB_B)
    prod = va * vb                                     # (B, W_PAD)
    # combination layer as VPU multiply + lane reduce (comb_w is zero beyond D)
    logit = (jnp.sum(prod * v[COMB_W:COMB_W + 1, :], axis=-1, keepdims=True)
             + v[COMB_B:COMB_B + 1, 0:1])              # (B, 1)
    # exact sigmoid via EUP tanh (no VPU divide); single store of the output
    out_ref[...] = 0.5 * (jnp.tanh(0.5 * logit) + 1.0)


@jax.jit
def matcher_forward(batch_a, batch_b, params):
    # PyTorch Conv1d layout NCL -> rows (batch-major, time within batch)
    def prep(x):
        return jnp.transpose(x, (0, 2, 1)).reshape(B * L, C_IN).astype(jnp.float32)

    xa, xb = prep(batch_a), prep(batch_b)
    vmem = lambda: pl.BlockSpec(memory_space=pltpu.MemorySpace.VMEM)
    out = pl.pallas_call(
        matcher_kernel,
        out_shape=jax.ShapeDtypeStruct((B, 1), jnp.float32),
        in_specs=[vmem(), vmem(), vmem(), vmem()],
        out_specs=vmem(),
        compiler_params=pltpu.CompilerParams(
            # allow XLA to fuse the NCL->NLC transpose/reshape into the inputs
            allow_input_fusion=[True, True, False, False]),
    )(xa, xb, params['w_packed'], params['v_packed'])
    return out.squeeze(-1)   # matches torch .squeeze() for B > 1 -> (B,)


def init_params(key):
    ks = jax.random.split(key, 10)

    def uni(k, shape, fan_in):
        bound = 1.0 / float(fan_in) ** 0.5
        return jax.random.uniform(k, shape, jnp.float32, minval=-bound, maxval=bound)

    fan_conv = C_IN * K
    # Conv1d weight stored im2col-ready as (K*C_IN, H): row index = k*C_IN + c
    conv_w_a = uni(ks[0], (K * C_IN, H), fan_conv)
    conv_b_a = uni(ks[1], (1, H), fan_conv)
    fc_w_a = uni(ks[2], (H, D), H)
    fc_b_a = uni(ks[3], (1, D), H)
    conv_w_b = uni(ks[4], (K * C_IN, H), fan_conv)
    conv_b_b = uni(ks[5], (1, H), fan_conv)
    fc_w_b = uni(ks[6], (H, D), H)
    fc_b_b = uni(ks[7], (1, D), H)
    comb_w = uni(ks[8], (1, D), D)     # combination_layer: Linear(D, 1) weight row
    comb_b = uni(ks[9], (1, 1), D)

    pad_w = lambda w: jnp.pad(w, ((0, 0), (0, W_PAD - w.shape[1])))
    # All matmul weights in one buffer (zero-padded lanes beyond D for the FC),
    # all bias/comb vectors in one (8, W_PAD) buffer -> 2 parameter DMAs total.
    w_packed = jnp.concatenate(
        [conv_w_a, conv_w_b, pad_w(fc_w_a), pad_w(fc_w_b)], axis=0)       # (320, 64)
    v_packed = jnp.concatenate(
        [conv_b_a, conv_b_b, pad_w(fc_b_a), pad_w(fc_b_b),
         pad_w(comb_w), pad_w(comb_b), jnp.zeros((2, W_PAD), jnp.float32)],
        axis=0)                                                            # (8, 64)
    return dict(w_packed=w_packed, v_packed=v_packed)


def matcher_reference(batch_a, batch_b, params):
    """Independent pure-JAX forward (no fold / no masking / no im2col)."""
    w, v = params['w_packed'], params['v_packed']

    def tower(x_ncl, cw_off, fw_off, cb_row, fb_row):
        x = jnp.transpose(x_ncl, (0, 2, 1)).astype(jnp.float32)   # (B, L, C)
        acc = jnp.zeros((B, L_OUT, H), jnp.float32)
        for k in range(K):
            acc = acc + jnp.einsum('blc,ch->blh', x[:, k:k + L_OUT, :],
                                   w[cw_off + k * C_IN: cw_off + (k + 1) * C_IN, :])
        conv = jnp.tanh(acc + v[cb_row, :])
        pooled = jnp.max(conv, axis=1)                            # (B, H)
        return jnp.tanh(pooled @ w[fw_off:fw_off + H, :D] + v[fb_row, :D])

    va = tower(batch_a, CW_A, FW_A, CB_A, FB_A)
    vb = tower(batch_b, CW_B, FW_B, CB_B, FB_B)
    logit = jnp.sum(va * vb * v[COMB_W, :D], axis=-1) + v[COMB_B, 0]
    return jax.nn.sigmoid(logit)


if __name__ == "__main__":
    key = jax.random.PRNGKey(0)
    kx, kp = jax.random.split(key)
    ka, kb = jax.random.split(kx)
    # PyTorch Conv1d layout NCL: (batch, channels, length)
    batch_a = jax.random.normal(ka, (B, C_IN, L), jnp.float32)
    batch_b = jax.random.normal(kb, (B, C_IN, L), jnp.float32)
    params = init_params(kp)

    out = matcher_forward(batch_a, batch_b, params)
    jax.block_until_ready(out)
    assert out.shape == (B,), out.shape

    ref = matcher_reference(batch_a, batch_b, params)
    assert bool(jnp.allclose(out, ref, atol=2e-3, rtol=0.0)), (out, ref)
    assert bool(jnp.all((out >= 0.0) & (out <= 1.0)))
    print("KERNEL_OK")
</pallas_src>

<mosaic_0001>
module attributes {stable_mosaic.version = 11 : i64} {
  func.func @matcher_kernel(%arg0: memref<32x32xf32, #tpu.memory_space<vmem>>, %arg1: memref<32x32xf32, #tpu.memory_space<vmem>>, %arg2: memref<320x64xf32, #tpu.memory_space<vmem>>, %arg3: memref<8x64xf32, #tpu.memory_space<vmem>>, %arg4: memref<2x1xf32, #tpu.memory_space<vmem>>) attributes {dimension_semantics = [], scalar_prefetch = 0 : i64, scratch_operands = 0 : i64, tpu.core_type = #tpu.core_type<tc>} {
    %c0 = arith.constant 0 : index
    %c0_0 = arith.constant 0 : index
    %0 = vector.load %arg3[%c0, %c0_0] : memref<8x64xf32, #tpu.memory_space<vmem>>, vector<8x64xf32>
    %c0_1 = arith.constant 0 : index
    %c0_2 = arith.constant 0 : index
    %1 = vector.load %arg0[%c0_1, %c0_2] : memref<32x32xf32, #tpu.memory_space<vmem>>, vector<32x32xf32>
    %2 = vector.extract_strided_slice %1 {offsets = [1, 0], sizes = [31, 32], strides = [1, 1]} : vector<32x32xf32> to vector<31x32xf32>
    %3 = vector.extract_strided_slice %1 {offsets = [0, 0], sizes = [1, 32], strides = [1, 1]} : vector<32x32xf32> to vector<1x32xf32>
    %4 = tpu.concatenate %2, %3 in 0 : vector<31x32xf32>, vector<1x32xf32> -> vector<32x32xf32>
    %5 = vector.extract_strided_slice %1 {offsets = [2, 0], sizes = [30, 32], strides = [1, 1]} : vector<32x32xf32> to vector<30x32xf32>
    %6 = vector.extract_strided_slice %1 {offsets = [0, 0], sizes = [2, 32], strides = [1, 1]} : vector<32x32xf32> to vector<2x32xf32>
    %7 = tpu.concatenate %5, %6 in 0 : vector<30x32xf32>, vector<2x32xf32> -> vector<32x32xf32>
    %8 = tpu.concatenate %1, %4, %7 in 1 : vector<32x32xf32>, vector<32x32xf32>, vector<32x32xf32> -> vector<32x96xf32>
    %c0_3 = arith.constant 0 : index
    %c0_4 = arith.constant 0 : index
    %9 = vector.load %arg2[%c0_3, %c0_4] : memref<320x64xf32, #tpu.memory_space<vmem>>, vector<96x64xf32>
    %cst = arith.constant dense<0.000000e+00> : vector<32x64xf32>
    %10 = tpu.matmul %8, %9, %cst {dimension_numbers = #tpu.dot_dimension_numbers<[1], [0], [0], [1], [0, 0, 1, 1], [], []>} : vector<32x96xf32>, vector<96x64xf32>, vector<32x64xf32> -> vector<32x64xf32>
    %11 = vector.extract_strided_slice %0 {offsets = [0, 0], sizes = [1, 64], strides = [1, 1]} : vector<8x64xf32> to vector<1x64xf32>
    %12 = vector.broadcast %11 : vector<1x64xf32> to vector<32x64xf32>
    %13 = arith.addf %10, %12 : vector<32x64xf32>
    %14 = math.tanh %13 : vector<32x64xf32>
    %15 = vector.shape_cast %14 : vector<32x64xf32> to vector<2x16x64xf32>
    %16 = tpu.iota {dimensions = array<i32: 1>} : vector<2x16x64xi32>
    %c14_i32 = arith.constant 14 : i32
    %17 = vector.broadcast %c14_i32 : i32 to vector<2x16x64xi32>
    %18 = arith.cmpi slt, %16, %17 : vector<2x16x64xi32>
    %cst_5 = arith.constant -2.000000e+00 : f32
    %19 = vector.broadcast %cst_5 : f32 to vector<2x16x64xf32>
    %20 = arith.select %18, %15, %19 : vector<2x16x64xi1>, vector<2x16x64xf32>
    %cst_6 = arith.constant dense<0xFF800000> : vector<2x64xf32>
    %21 = vector.multi_reduction <maximumf>, %20, %cst_6 [1] : vector<2x16x64xf32> to vector<2x64xf32>
    %c192 = arith.constant 192 : index
    %c0_7 = arith.constant 0 : index
    %22 = vector.load %arg2[%c192, %c0_7] : memref<320x64xf32, #tpu.memory_space<vmem>>, vector<64x64xf32>
    %cst_8 = arith.constant dense<0.000000e+00> : vector<2x64xf32>
    %23 = tpu.matmul %21, %22, %cst_8 {dimension_numbers = #tpu.dot_dimension_numbers<[1], [0], [0], [1], [0, 0, 1, 1], [], []>} : vector<2x64xf32>, vector<64x64xf32>, vector<2x64xf32> -> vector<2x64xf32>
    %24 = vector.extract_strided_slice %0 {offsets = [2, 0], sizes = [1, 64], strides = [1, 1]} : vector<8x64xf32> to vector<1x64xf32>
    %25 = vector.broadcast %24 : vector<1x64xf32> to vector<2x64xf32>
    %26 = arith.addf %23, %25 : vector<2x64xf32>
    %27 = math.tanh %26 : vector<2x64xf32>
    %c0_9 = arith.constant 0 : index
    %c0_10 = arith.constant 0 : index
    %28 = vector.load %arg1[%c0_9, %c0_10] : memref<32x32xf32, #tpu.memory_space<vmem>>, vector<32x32xf32>
    %29 = vector.extract_strided_slice %28 {offsets = [1, 0], sizes = [31, 32], strides = [1, 1]} : vector<32x32xf32> to vector<31x32xf32>
    %30 = vector.extract_strided_slice %28 {offsets = [0, 0], sizes = [1, 32], strides = [1, 1]} : vector<32x32xf32> to vector<1x32xf32>
    %31 = tpu.concatenate %29, %30 in 0 : vector<31x32xf32>, vector<1x32xf32> -> vector<32x32xf32>
    %32 = vector.extract_strided_slice %28 {offsets = [2, 0], sizes = [30, 32], strides = [1, 1]} : vector<32x32xf32> to vector<30x32xf32>
    %33 = vector.extract_strided_slice %28 {offsets = [0, 0], sizes = [2, 32], strides = [1, 1]} : vector<32x32xf32> to vector<2x32xf32>
    %34 = tpu.concatenate %32, %33 in 0 : vector<30x32xf32>, vector<2x32xf32> -> vector<32x32xf32>
    %35 = tpu.concatenate %28, %31, %34 in 1 : vector<32x32xf32>, vector<32x32xf32>, vector<32x32xf32> -> vector<32x96xf32>
    %c96 = arith.constant 96 : index
    %c0_11 = arith.constant 0 : index
    %36 = vector.load %arg2[%c96, %c0_11] : memref<320x64xf32, #tpu.memory_space<vmem>>, vector<96x64xf32>
    %cst_12 = arith.constant dense<0.000000e+00> : vector<32x64xf32>
    %37 = tpu.matmul %35, %36, %cst_12 {dimension_numbers = #tpu.dot_dimension_numbers<[1], [0], [0], [1], [0, 0, 1, 1], [], []>} : vector<32x96xf32>, vector<96x64xf32>, vector<32x64xf32> -> vector<32x64xf32>
    %38 = vector.extract_strided_slice %0 {offsets = [1, 0], sizes = [1, 64], strides = [1, 1]} : vector<8x64xf32> to vector<1x64xf32>
    %39 = vector.broadcast %38 : vector<1x64xf32> to vector<32x64xf32>
    %40 = arith.addf %37, %39 : vector<32x64xf32>
    %41 = math.tanh %40 : vector<32x64xf32>
    %42 = vector.shape_cast %41 : vector<32x64xf32> to vector<2x16x64xf32>
    %43 = tpu.iota {dimensions = array<i32: 1>} : vector<2x16x64xi32>
    %c14_i32_13 = arith.constant 14 : i32
    %44 = vector.broadcast %c14_i32_13 : i32 to vector<2x16x64xi32>
    %45 = arith.cmpi slt, %43, %44 : vector<2x16x64xi32>
    %cst_14 = arith.constant -2.000000e+00 : f32
    %46 = vector.broadcast %cst_14 : f32 to vector<2x16x64xf32>
    %47 = arith.select %45, %42, %46 : vector<2x16x64xi1>, vector<2x16x64xf32>
    %cst_15 = arith.constant dense<0xFF800000> : vector<2x64xf32>
    %48 = vector.multi_reduction <maximumf>, %47, %cst_15 [1] : vector<2x16x64xf32> to vector<2x64xf32>
    %c256 = arith.constant 256 : index
    %c0_16 = arith.constant 0 : index
    %49 = vector.load %arg2[%c256, %c0_16] : memref<320x64xf32, #tpu.memory_space<vmem>>, vector<64x64xf32>
    %cst_17 = arith.constant dense<0.000000e+00> : vector<2x64xf32>
    %50 = tpu.matmul %48, %49, %cst_17 {dimension_numbers = #tpu.dot_dimension_numbers<[1], [0], [0], [1], [0, 0, 1, 1], [], []>} : vector<2x64xf32>, vector<64x64xf32>, vector<2x64xf32> -> vector<2x64xf32>
    %51 = vector.extract_strided_slice %0 {offsets = [3, 0], sizes = [1, 64], strides = [1, 1]} : vector<8x64xf32> to vector<1x64xf32>
    %52 = vector.broadcast %51 : vector<1x64xf32> to vector<2x64xf32>
    %53 = arith.addf %50, %52 : vector<2x64xf32>
    %54 = math.tanh %53 : vector<2x64xf32>
    %55 = arith.mulf %27, %54 : vector<2x64xf32>
    %56 = vector.extract_strided_slice %0 {offsets = [4, 0], sizes = [1, 64], strides = [1, 1]} : vector<8x64xf32> to vector<1x64xf32>
    %57 = vector.broadcast %56 : vector<1x64xf32> to vector<2x64xf32>
    %58 = arith.mulf %55, %57 : vector<2x64xf32>
    %cst_18 = arith.constant dense<0.000000e+00> : vector<2xf32>
    %59 = vector.multi_reduction <add>, %58, %cst_18 [1] : vector<2x64xf32> to vector<2xf32>
    %60 = vector.shape_cast %59 : vector<2xf32> to vector<2x1xf32>
    %61 = vector.extract_strided_slice %0 {offsets = [5, 0], sizes = [1, 1], strides = [1, 1]} : vector<8x64xf32> to vector<1x1xf32>
    %62 = vector.broadcast %61 : vector<1x1xf32> to vector<2x1xf32>
    %63 = arith.addf %60, %62 : vector<2x1xf32>
    %cst_19 = arith.constant 5.000000e-01 : f32
    %64 = vector.broadcast %cst_19 : f32 to vector<2x1xf32>
    %65 = arith.mulf %64, %63 : vector<2x1xf32>
    %66 = math.tanh %65 : vector<2x1xf32>
    %cst_20 = arith.constant 1.000000e+00 : f32
    %67 = vector.broadcast %cst_20 : f32 to vector<2x1xf32>
    %68 = arith.addf %66, %67 : vector<2x1xf32>
    %cst_21 = arith.constant 5.000000e-01 : f32
    %69 = vector.broadcast %cst_21 : f32 to vector<2x1xf32>
    %70 = arith.mulf %69, %68 : vector<2x1xf32>
    %c0_22 = arith.constant 0 : index
    %c0_23 = arith.constant 0 : index
    %71 = vector.load %arg4[%c0_22, %c0_23] : memref<2x1xf32, #tpu.memory_space<vmem>>, vector<2x1xf32>
    tpu.vector_store %arg4[%c0_22, %c0_23], %70 {strides = array<i32>} : memref<2x1xf32, #tpu.memory_space<vmem>>, vector<2x1xf32>,
    return
  }
}

</mosaic_0001>

<llo_original>
// kernel: matcher_forward.1
$region0: #{matcher_forward.1}
  #allocation0 [shape = 'u32[]', space=smem, size = 0x4, offset = 0x4, fixed_abs, tag = 'smem constant byte address 0x4 - core index']
  #allocation1 [shape = 'u32[144,128]{1,0:T(1,128)}', space=vmem, size = 0x12000, scoped, tag = 'internal scratch']
  %s0 = inlined_call_operand.vmem [shape: f32[32,32], index: 0, kind: input, shape index: {}]
  %s1 = inlined_call_operand.vmem [shape: f32[32,32], index: 1, kind: input, shape index: {}]
  %s2 = inlined_call_operand.vmem [shape: f32[320,64], index: 2, kind: input, shape index: {}]
  %s3 = inlined_call_operand.vmem [shape: f32[8,64], index: 3, kind: input, shape index: {}]
  %s4 = inlined_call_operand.vmem [shape: f32[2,1], index: 4, kind: output, shape index: {}]
  %s5 = sld [smem:[#allocation0]]
  $region26: #{matcher_forward.1} parent=0
    _
  %s7 = ssub.s32 1, %s5
  %s8 = scalar_select 0, %s7, %s5
  // Predicated region
  $region2: #{matcher_forward.1} parent=0 // pred_check
    _
  $region3: #{matcher_forward.1} parent=0 // pred_check_branch
    %10 = sbr.rel (0) target = $region5
  $region4: #{matcher_forward.1} parent=0 // pred_region
    _
  $region5: #{matcher_forward.1} parent=0 // pred_fallthru
    _
  // Predicated region
  $region6: #{matcher_forward.1} parent=0 // pred_check
    _
  $region7: #{matcher_forward.1} parent=0 // pred_check_branch
    %12 = sbr.rel (0) target = $region9
  $region8: #{matcher_forward.1} parent=0 // pred_region
    _
  $region9: #{matcher_forward.1} parent=0 // pred_fallthru
    _
  // Predicated region
  $region10: #{matcher_forward.1} parent=0 // pred_check
    _
  $region11: #{matcher_forward.1} parent=0 // pred_check_branch
    %14 = sbr.rel (0) target = $region13
  $region12: #{matcher_forward.1} parent=0 // pred_region
    _
  $region13: #{matcher_forward.1} parent=0 // pred_fallthru
    _
  // Predicated region
  $region14: #{matcher_forward.1} parent=0 // pred_check
    _
  $region15: #{matcher_forward.1} parent=0 // pred_check_branch
    %16 = sbr.rel (0) target = $region17
  $region16: #{matcher_forward.1} parent=0 // pred_region
    _
  $region17: #{matcher_forward.1} parent=0 // pred_fallthru
    _
  %v17 = vld [vmem:[%s3] sm:$0xff]
  %v18 = vld [vmem:[%s0] sm:$0xff]
  %v19 = vld [vmem:[%s0 + $0x8] sm:$0xff]
  %v20 = vld [vmem:[%s0 + $0x10] sm:$0xff]
  %v21 = vld [vmem:[%s0 + $0x18] sm:$0xff]
  %vm26 = vcmask 1046528
  %v27 = vrot.slane %v18, 1
  %v28 = vrot.slane %v19, 1
  %v29 = vsel %vm26, %v27, %v28
  %v30 = vrot.slane %v20, 1
  %v31 = vsel %vm26, %v28, %v30
  %v32 = vrot.slane %v21, 1
  %v33 = vsel %vm26, %v30, %v32
  %v36 = vsel %vm26, %v32, %v27
  %vm37 = vcmask 1045504
  %v38 = vrot.slane %v18, 2
  %v39 = vrot.slane %v19, 2
  %v40 = vsel %vm37, %v38, %v39
  %v41 = vrot.slane %v20, 2
  %v42 = vsel %vm37, %v39, %v41
  %v43 = vrot.slane %v21, 2
  %v44 = vsel %vm37, %v41, %v43
  %v47 = vsel %vm37, %v43, %v38
  %49 = vrot.lane.b32.xlu0 %v29, 32
  %v50 = vpop.permute.xlu0 %49
  %51 = vrot.lane.b32.xlu0 %v31, 32
  %v52 = vpop.permute.xlu0 %51
  %53 = vrot.lane.b32.xlu0 %v33, 32
  %v54 = vpop.permute.xlu0 %53
  %55 = vrot.lane.b32.xlu0 %v36, 32
  %v56 = vpop.permute.xlu0 %55
  %62 = vrot.lane.b32.xlu0 %v40, 64
  %v63 = vpop.permute.xlu0 %62
  %64 = vrot.lane.b32.xlu0 %v42, 64
  %v65 = vpop.permute.xlu0 %64
  %66 = vrot.lane.b32.xlu0 %v44, 64
  %v67 = vpop.permute.xlu0 %66
  %68 = vrot.lane.b32.xlu0 %v47, 64
  %v69 = vpop.permute.xlu0 %68
  %vm74 = vcmask 261120
  %v75 = vsel %vm74, %v18, %v50
  %v76 = vsel %vm74, %v19, %v52
  %v77 = vsel %vm74, %v20, %v54
  %v78 = vsel %vm74, %v21, %v56
  %vm79 = vcmask 523264
  %v80 = vsel %vm79, %v75, %v63
  %v81 = vsel %vm79, %v76, %v65
  %v82 = vsel %vm79, %v77, %v67
  %v83 = vsel %vm79, %v78, %v69
  %v84 = vld [vmem:[%s2] sm:$0xff]
  %v85 = vld [vmem:[%s2 + $0x8] sm:$0xff]
  %v86 = vld [vmem:[%s2 + $0x10] sm:$0xff]
  %v87 = vld [vmem:[%s2 + $0x18] sm:$0xff]
  %v88 = vld [vmem:[%s2 + $0x20] sm:$0xff]
  %v89 = vld [vmem:[%s2 + $0x28] sm:$0xff]
  %v90 = vld [vmem:[%s2 + $0x30] sm:$0xff]
  %v91 = vld [vmem:[%s2 + $0x38] sm:$0xff]
  %v92 = vld [vmem:[%s2 + $0x40] sm:$0xff]
  %v93 = vld [vmem:[%s2 + $0x48] sm:$0xff]
  %v94 = vld [vmem:[%s2 + $0x50] sm:$0xff]
  %v95 = vld [vmem:[%s2 + $0x58] sm:$0xff]
  %v96 = vlaneseq
  %v97 = vshrl.u32 %v96, 7
  %v98 = vsub.s32 0, %v97
  %v99 = vrot.slane %v17, %v98
  %vm100 = vcmask 785408
  %v102 = vsel %vm100, %v80, 0
  %v105 = vsel %vm100, %v81, 0
  %v108 = vsel %vm100, %v82, 0
  %v111 = vsel %vm100, %v83, 0
  %113 = vmatprep.subr.mxu0 0.0
  %114 = vmatpush1.msra.mxu0 0.0
  %115 = vmatprep.subr.mxu0 0.0
  %116 = vmatpush1.msra.mxu0 0.0
  %117 = vmatprep.subr.mxu0 0.0
  %118 = vmatpush1.msra.mxu0 0.0
  %119 = vmatprep.subr.mxu0 0.0
  %120 = vmatpush1.msra.mxu0 0.0
  %121 = vmatprep.subr.mxu0 0.0
  %122 = vmatpush1.msra.mxu0 %v95
  %123 = vmatprep.subr.mxu0 0.0
  %124 = vmatpush1.msra.mxu0 %v94
  %125 = vmatprep.subr.mxu0 0.0
  %126 = vmatpush1.msra.mxu0 %v93
  %127 = vmatprep.subr.mxu0 0.0
  %128 = vmatpush1.msra.mxu0 %v92
  %129 = vmatprep.subr.mxu0 0.0
  %130 = vmatpush1.msra.mxu0 %v91
  %131 = vmatprep.subr.mxu0 0.0
  %132 = vmatpush1.msra.mxu0 %v90
  %133 = vmatprep.subr.mxu0 0.0
  %134 = vmatpush1.msra.mxu0 %v89
  %135 = vmatprep.subr.mxu0 0.0
  %136 = vmatpush1.msra.mxu0 %v88
  %137 = vmatprep.subr.mxu0 0.0
  %138 = vmatpush1.msra.mxu0 %v87
  %139 = vmatprep.subr.mxu0 0.0
  %140 = vmatpush1.msra.mxu0 %v86
  %141 = vmatprep.subr.mxu0 0.0
  %142 = vmatpush1.msra.mxu0 %v85
  %143 = vmatprep.subr.mxu0 0.0
  %144 = vmatpush1.msra.mxu0 %v84
  %145 = vmatprep.subr.mxu0 0.0
  %146 = vmatpush2.msra.mxu0 0.0
  %147 = vmatprep.subr.mxu0 0.0
  %148 = vmatpush2.msra.mxu0 0.0
  %149 = vmatprep.subr.mxu0 0.0
  %150 = vmatpush2.msra.mxu0 0.0
  %151 = vmatprep.subr.mxu0 0.0
  %152 = vmatpush2.msra.mxu0 0.0
  %153 = vmatprep.subr.mxu0 0.0
  %154 = vmatpush2.msra.mxu0 0.0
  %155 = vmatprep.subr.mxu0 0.0
  %156 = vmatpush2.msra.mxu0 0.0
  %157 = vmatprep.subr.mxu0 0.0
  %158 = vmatpush2.msra.mxu0 0.0
  %159 = vmatprep.subr.mxu0 0.0
  %160 = vmatpush2.msra.mxu0 0.0
  %161 = vmatprep.subr.mxu0 0.0
  %162 = vmatpush2.msra.mxu0 0.0
  %163 = vmatprep.subr.mxu0 0.0
  %164 = vmatpush2.msra.mxu0 0.0
  %165 = vmatprep.subr.mxu0 0.0
  %166 = vmatpush2.msra.mxu0 0.0
  %167 = vmatprep.subr.mxu0 0.0
  %168 = vmatpush2.msra.mxu0 0.0
  %169 = vmatprep.subr.mxu0 0.0
  %170 = vmatpush2.msra.mxu0 0.0
  %171 = vmatprep.subr.mxu0 0.0
  %172 = vmatpush2.msra.mxu0 0.0
  %173 = vmatprep.subr.mxu0 0.0
  %174 = vmatpush2.msra.mxu0 0.0
  %175 = vmatprep.subr.mxu0 0.0
  %176 = vmatpush2.msra.mxu0 0.0
  %177 = vmatprep.mubr.f32.mxu0 0.0
  %178 = vmatmul.mubr.f32.gmra.mxu0 %v102
  %v179 = vpop.f32.mrf.mxu0
  %v180 = vadd.f32 %v99, %v179
  %v181 = vpop.f32.mrf.mxu0
  %182 = vmatprep.mubr.f32.mxu0 0.0
  %183 = vmatmul.mubr.f32.gmra.mxu0 %v105
  %v184 = vpop.f32.mrf.mxu0
  %v185 = vadd.f32 %v99, %v184
  %v186 = vpop.f32.mrf.mxu0
  %187 = vmatprep.mubr.f32.mxu0 0.0
  %188 = vmatmul.mubr.f32.gmra.mxu0 %v108
  %v189 = vpop.f32.mrf.mxu0
  %v190 = vadd.f32 %v99, %v189
  %v191 = vpop.f32.mrf.mxu0
  %192 = vmatprep.mubr.f32.mxu0 0.0
  %193 = vmatmul.mubr.f32.gmra.mxu0 %v111
  %v194 = vpop.f32.mrf.mxu0
  %v195 = vadd.f32 %v99, %v194
  %v196 = vpop.f32.mrf.mxu0
  %197 = vdwg.mxu0
  %v198 = vtanh.pop %v180
  %v199 = vtanh.pop %v185
  %v200 = vtanh.pop %v190
  %v201 = vtanh.pop %v195
  %v202 = vlaneseq
  %v203 = vshrl.u32 %v202, 7
  %v204 = vadd.s32 %v203, 8
  %vm205 = vcmp.lt.s32.totalorder %v203, 14
  %vm206 = vcmp.lt.s32.totalorder %v204, 14
  %v207 = vsel %vm205, %v198, -2.0
  %v208 = vsel %vm206, %v199, -2.0
  %v209 = vsel %vm205, %v200, -2.0
  %v210 = vsel %vm206, %v201, -2.0
  %v211 = vsel %vm79, %v207, -inf
  %v212 = vsel %vm79, %v208, -inf
  %v213 = vmax.f32 %v211, %v212
  %v214 = vrot.slane %v213, 4
  %v215 = vmax.f32 %v213, %v214
  %v216 = vrot.slane %v215, 2
  %v217 = vmax.f32 %v215, %v216
  %v218 = vrot.slane %v217, 1
  %v219 = vmax.f32 %v217, %v218
  %v220 = vsel %vm79, %v209, -inf
  %v221 = vsel %vm79, %v210, -inf
  %v222 = vmax.f32 %v220, %v221
  %v223 = vrot.slane %v222, 4
  %v224 = vmax.f32 %v222, %v223
  %v225 = vrot.slane %v224, 2
  %v226 = vmax.f32 %v224, %v225
  %v227 = vrot.slane %v226, 1
  %v228 = vmax.f32 %v226, %v227
  %v229 = vld [vmem:[%s2 + $0xc0] sm:$0xff]
  %v230 = vld [vmem:[%s2 + $0xc8] sm:$0xff]
  %v231 = vld [vmem:[%s2 + $0xd0] sm:$0xff]
  %v232 = vld [vmem:[%s2 + $0xd8] sm:$0xff]
  %v233 = vld [vmem:[%s2 + $0xe0] sm:$0xff]
  %v234 = vld [vmem:[%s2 + $0xe8] sm:$0xff]
  %v235 = vld [vmem:[%s2 + $0xf0] sm:$0xff]
  %v236 = vld [vmem:[%s2 + $0xf8] sm:$0xff]
  %v237 = vlaneseq
  %v238 = vshrl.u32 %v237, 7
  %v239 = vsub.s32 2, %v238
  %v240 = vrot.slane %v17, %v239
  %vm243 = vcmask 1041409
  %v244 = vsel %vm243, %v228, %v219
  %v245 = vsel %vm79, %v244, 0
  %247 = vmatprep.subr.mxu0 0.0
  %248 = vmatpush1.msra.mxu0 0.0
  %249 = vmatprep.subr.mxu0 0.0
  %250 = vmatpush1.msra.mxu0 0.0
  %251 = vmatprep.subr.mxu0 0.0
  %252 = vmatpush1.msra.mxu0 0.0
  %253 = vmatprep.subr.mxu0 0.0
  %254 = vmatpush1.msra.mxu0 0.0
  %255 = vmatprep.subr.mxu0 0.0
  %256 = vmatpush1.msra.mxu0 0.0
  %257 = vmatprep.subr.mxu0 0.0
  %258 = vmatpush1.msra.mxu0 0.0
  %259 = vmatprep.subr.mxu0 0.0
  %260 = vmatpush1.msra.mxu0 0.0
  %261 = vmatprep.subr.mxu0 0.0
  %262 = vmatpush1.msra.mxu0 0.0
  %263 = vmatprep.subr.mxu0 0.0
  %264 = vmatpush1.msra.mxu0 %v236
  %265 = vmatprep.subr.mxu0 0.0
  %266 = vmatpush1.msra.mxu0 %v235
  %267 = vmatprep.subr.mxu0 0.0
  %268 = vmatpush1.msra.mxu0 %v234
  %269 = vmatprep.subr.mxu0 0.0
  %270 = vmatpush1.msra.mxu0 %v233
  %271 = vmatprep.subr.mxu0 0.0
  %272 = vmatpush1.msra.mxu0 %v232
  %273 = vmatprep.subr.mxu0 0.0
  %274 = vmatpush1.msra.mxu0 %v231
  %275 = vmatprep.subr.mxu0 0.0
  %276 = vmatpush1.msra.mxu0 %v230
  %277 = vmatprep.subr.mxu0 0.0
  %278 = vmatpush1.msra.mxu0 %v229
  %279 = vmatprep.subr.mxu0 0.0
  %280 = vmatpush2.msra.mxu0 0.0
  %281 = vmatprep.subr.mxu0 0.0
  %282 = vmatpush2.msra.mxu0 0.0
  %283 = vmatprep.subr.mxu0 0.0
  %284 = vmatpush2.msra.mxu0 0.0
  %285 = vmatprep.subr.mxu0 0.0
  %286 = vmatpush2.msra.mxu0 0.0
  %287 = vmatprep.subr.mxu0 0.0
  %288 = vmatpush2.msra.mxu0 0.0
  %289 = vmatprep.subr.mxu0 0.0
  %290 = vmatpush2.msra.mxu0 0.0
  %291 = vmatprep.subr.mxu0 0.0
  %292 = vmatpush2.msra.mxu0 0.0
  %293 = vmatprep.subr.mxu0 0.0
  %294 = vmatpush2.msra.mxu0 0.0
  %295 = vmatprep.subr.mxu0 0.0
  %296 = vmatpush2.msra.mxu0 0.0
  %297 = vmatprep.subr.mxu0 0.0
  %298 = vmatpush2.msra.mxu0 0.0
  %299 = vmatprep.subr.mxu0 0.0
  %300 = vmatpush2.msra.mxu0 0.0
  %301 = vmatprep.subr.mxu0 0.0
  %302 = vmatpush2.msra.mxu0 0.0
  %303 = vmatprep.subr.mxu0 0.0
  %304 = vmatpush2.msra.mxu0 0.0
  %305 = vmatprep.subr.mxu0 0.0
  %306 = vmatpush2.msra.mxu0 0.0
  %307 = vmatprep.subr.mxu0 0.0
  %308 = vmatpush2.msra.mxu0 0.0
  %309 = vmatprep.subr.mxu0 0.0
  %310 = vmatpush2.msra.mxu0 0.0
  %311 = vmatprep.mubr.f32.mxu0 0.0
  %312 = vmatmul.mubr.f32.gmra.mxu0 %v245
  %v313 = vpop.f32.mrf.mxu0
  %v314 = vadd.f32 %v240, %v313
  %v315 = vpop.f32.mrf.mxu0
  %316 = vdwg.mxu0
  %v317 = vtanh.pop %v314
  %v318 = vld [vmem:[%s1] sm:$0xff]
  %v319 = vld [vmem:[%s1 + $0x8] sm:$0xff]
  %v320 = vld [vmem:[%s1 + $0x10] sm:$0xff]
  %v321 = vld [vmem:[%s1 + $0x18] sm:$0xff]
  %v326 = vrot.slane %v318, 1
  %v327 = vrot.slane %v319, 1
  %v328 = vsel %vm26, %v326, %v327
  %v329 = vrot.slane %v320, 1
  %v330 = vsel %vm26, %v327, %v329
  %v331 = vrot.slane %v321, 1
  %v332 = vsel %vm26, %v329, %v331
  %v335 = vsel %vm26, %v331, %v326
  %v336 = vrot.slane %v318, 2
  %v337 = vrot.slane %v319, 2
  %v338 = vsel %vm37, %v336, %v337
  %v339 = vrot.slane %v320, 2
  %v340 = vsel %vm37, %v337, %v339
  %v341 = vrot.slane %v321, 2
  %v342 = vsel %vm37, %v339, %v341
  %v345 = vsel %vm37, %v341, %v336
  %347 = vrot.lane.b32.xlu0 %v328, 32
  %v348 = vpop.permute.xlu0 %347
  %349 = vrot.lane.b32.xlu0 %v330, 32
  %v350 = vpop.permute.xlu0 %349
  %351 = vrot.lane.b32.xlu0 %v332, 32
  %v352 = vpop.permute.xlu0 %351
  %353 = vrot.lane.b32.xlu0 %v335, 32
  %v354 = vpop.permute.xlu0 %353
  %360 = vrot.lane.b32.xlu0 %v338, 64
  %v361 = vpop.permute.xlu0 %360
  %362 = vrot.lane.b32.xlu0 %v340, 64
  %v363 = vpop.permute.xlu0 %362
  %364 = vrot.lane.b32.xlu0 %v342, 64
  %v365 = vpop.permute.xlu0 %364
  %366 = vrot.lane.b32.xlu0 %v345, 64
  %v367 = vpop.permute.xlu0 %366
  %v372 = vsel %vm74, %v318, %v348
  %v373 = vsel %vm74, %v319, %v350
  %v374 = vsel %vm74, %v320, %v352
  %v375 = vsel %vm74, %v321, %v354
  %v376 = vsel %vm79, %v372, %v361
  %v377 = vsel %vm79, %v373, %v363
  %v378 = vsel %vm79, %v374, %v365
  %v379 = vsel %vm79, %v375, %v367
  %v380 = vld [vmem:[%s2 + $0x60] sm:$0xff]
  %v381 = vld [vmem:[%s2 + $0x68] sm:$0xff]
  %v382 = vld [vmem:[%s2 + $0x70] sm:$0xff]
  %v383 = vld [vmem:[%s2 + $0x78] sm:$0xff]
  %v384 = vld [vmem:[%s2 + $0x80] sm:$0xff]
  %v385 = vld [vmem:[%s2 + $0x88] sm:$0xff]
  %v386 = vld [vmem:[%s2 + $0x90] sm:$0xff]
  %v387 = vld [vmem:[%s2 + $0x98] sm:$0xff]
  %v388 = vld [vmem:[%s2 + $0xa0] sm:$0xff]
  %v389 = vld [vmem:[%s2 + $0xa8] sm:$0xff]
  %v390 = vld [vmem:[%s2 + $0xb0] sm:$0xff]
  %v391 = vld [vmem:[%s2 + $0xb8] sm:$0xff]
  %v392 = vlaneseq
  %v393 = vshrl.u32 %v392, 7
  %v394 = vsub.s32 1, %v393
  %v395 = vrot.slane %v17, %v394
  %v397 = vsel %vm100, %v376, 0
  %v400 = vsel %vm100, %v377, 0
  %v403 = vsel %vm100, %v378, 0
  %v406 = vsel %vm100, %v379, 0
  %408 = vmatprep.subr.mxu0 0.0
  %409 = vmatpush1.msra.mxu0 0.0
  %410 = vmatprep.subr.mxu0 0.0
  %411 = vmatpush1.msra.mxu0 0.0
  %412 = vmatprep.subr.mxu0 0.0
  %413 = vmatpush1.msra.mxu0 0.0
  %414 = vmatprep.subr.mxu0 0.0
  %415 = vmatpush1.msra.mxu0 0.0
  %416 = vmatprep.subr.mxu0 0.0
  %417 = vmatpush1.msra.mxu0 %v391
  %418 = vmatprep.subr.mxu0 0.0
  %419 = vmatpush1.msra.mxu0 %v390
  %420 = vmatprep.subr.mxu0 0.0
  %421 = vmatpush1.msra.mxu0 %v389
  %422 = vmatprep.subr.mxu0 0.0
  %423 = vmatpush1.msra.mxu0 %v388
  %424 = vmatprep.subr.mxu0 0.0
  %425 = vmatpush1.msra.mxu0 %v387
  %426 = vmatprep.subr.mxu0 0.0
  %427 = vmatpush1.msra.mxu0 %v386
  %428 = vmatprep.subr.mxu0 0.0
  %429 = vmatpush1.msra.mxu0 %v385
  %430 = vmatprep.subr.mxu0 0.0
  %431 = vmatpush1.msra.mxu0 %v384
  %432 = vmatprep.subr.mxu0 0.0
  %433 = vmatpush1.msra.mxu0 %v383
  %434 = vmatprep.subr.mxu0 0.0
  %435 = vmatpush1.msra.mxu0 %v382
  %436 = vmatprep.subr.mxu0 0.0
  %437 = vmatpush1.msra.mxu0 %v381
  %438 = vmatprep.subr.mxu0 0.0
  %439 = vmatpush1.msra.mxu0 %v380
  %440 = vmatprep.subr.mxu0 0.0
  %441 = vmatpush2.msra.mxu0 0.0
  %442 = vmatprep.subr.mxu0 0.0
  %443 = vmatpush2.msra.mxu0 0.0
  %444 = vmatprep.subr.mxu0 0.0
  %445 = vmatpush2.msra.mxu0 0.0
  %446 = vmatprep.subr.mxu0 0.0
  %447 = vmatpush2.msra.mxu0 0.0
  %448 = vmatprep.subr.mxu0 0.0
  %449 = vmatpush2.msra.mxu0 0.0
  %450 = vmatprep.subr.mxu0 0.0
  %451 = vmatpush2.msra.mxu0 0.0
  %452 = vmatprep.subr.mxu0 0.0
  %453 = vmatpush2.msra.mxu0 0.0
  %454 = vmatprep.subr.mxu0 0.0
  %455 = vmatpush2.msra.mxu0 0.0
  %456 = vmatprep.subr.mxu0 0.0
  %457 = vmatpush2.msra.mxu0 0.0
  %458 = vmatprep.subr.mxu0 0.0
  %459 = vmatpush2.msra.mxu0 0.0
  %460 = vmatprep.subr.mxu0 0.0
  %461 = vmatpush2.msra.mxu0 0.0
  %462 = vmatprep.subr.mxu0 0.0
  %463 = vmatpush2.msra.mxu0 0.0
  %464 = vmatprep.subr.mxu0 0.0
  %465 = vmatpush2.msra.mxu0 0.0
  %466 = vmatprep.subr.mxu0 0.0
  %467 = vmatpush2.msra.mxu0 0.0
  %468 = vmatprep.subr.mxu0 0.0
  %469 = vmatpush2.msra.mxu0 0.0
  %470 = vmatprep.subr.mxu0 0.0
  %471 = vmatpush2.msra.mxu0 0.0
  %472 = vmatprep.mubr.f32.mxu0 0.0
  %473 = vmatmul.mubr.f32.gmra.mxu0 %v397
  %v474 = vpop.f32.mrf.mxu0
  %v475 = vadd.f32 %v395, %v474
  %v476 = vpop.f32.mrf.mxu0
  %477 = vmatprep.mubr.f32.mxu0 0.0
  %478 = vmatmul.mubr.f32.gmra.mxu0 %v400
  %v479 = vpop.f32.mrf.mxu0
  %v480 = vadd.f32 %v395, %v479
  %v481 = vpop.f32.mrf.mxu0
  %482 = vmatprep.mubr.f32.mxu0 0.0
  %483 = vmatmul.mubr.f32.gmra.mxu0 %v403
  %v484 = vpop.f32.mrf.mxu0
  %v485 = vadd.f32 %v395, %v484
  %v486 = vpop.f32.mrf.mxu0
  %487 = vmatprep.mubr.f32.mxu0 0.0
  %488 = vmatmul.mubr.f32.gmra.mxu0 %v406
  %v489 = vpop.f32.mrf.mxu0
  %v490 = vadd.f32 %v395, %v489
  %v491 = vpop.f32.mrf.mxu0
  %492 = vdwg.mxu0
  %v493 = vtanh.pop %v475
  %v494 = vtanh.pop %v480
  %v495 = vtanh.pop %v485
  %v496 = vtanh.pop %v490
  %v497 = vsel %vm205, %v493, -2.0
  %v498 = vsel %vm206, %v494, -2.0
  %v499 = vsel %vm205, %v495, -2.0
  %v500 = vsel %vm206, %v496, -2.0
  %v501 = vsel %vm79, %v497, -inf
  %v502 = vsel %vm79, %v498, -inf
  %v503 = vmax.f32 %v501, %v502
  %v504 = vrot.slane %v503, 4
  %v505 = vmax.f32 %v503, %v504
  %v506 = vrot.slane %v505, 2
  %v507 = vmax.f32 %v505, %v506
  %v508 = vrot.slane %v507, 1
  %v509 = vmax.f32 %v507, %v508
  %v510 = vsel %vm79, %v499, -inf
  %v511 = vsel %vm79, %v500, -inf
  %v512 = vmax.f32 %v510, %v511
  %v513 = vrot.slane %v512, 4
  %v514 = vmax.f32 %v512, %v513
  %v515 = vrot.slane %v514, 2
  %v516 = vmax.f32 %v514, %v515
  %v517 = vrot.slane %v516, 1
  %v518 = vmax.f32 %v516, %v517
  %v519 = vld [vmem:[%s2 + $0x100] sm:$0xff]
  %v520 = vld [vmem:[%s2 + $0x108] sm:$0xff]
  %v521 = vld [vmem:[%s2 + $0x110] sm:$0xff]
  %v522 = vld [vmem:[%s2 + $0x118] sm:$0xff]
  %v523 = vld [vmem:[%s2 + $0x120] sm:$0xff]
  %v524 = vld [vmem:[%s2 + $0x128] sm:$0xff]
  %v525 = vld [vmem:[%s2 + $0x130] sm:$0xff]
  %v526 = vld [vmem:[%s2 + $0x138] sm:$0xff]
  %v527 = vlaneseq
  %v528 = vshrl.u32 %v527, 7
  %v529 = vsub.s32 3, %v528
  %v530 = vrot.slane %v17, %v529
  %v533 = vsel %vm243, %v518, %v509
  %v534 = vsel %vm79, %v533, 0
  %536 = vmatprep.subr.mxu0 0.0
  %537 = vmatpush1.msra.mxu0 0.0
  %538 = vmatprep.subr.mxu0 0.0
  %539 = vmatpush1.msra.mxu0 0.0
  %540 = vmatprep.subr.mxu0 0.0
  %541 = vmatpush1.msra.mxu0 0.0
  %542 = vmatprep.subr.mxu0 0.0
  %543 = vmatpush1.msra.mxu0 0.0
  %544 = vmatprep.subr.mxu0 0.0
  %545 = vmatpush1.msra.mxu0 0.0
  %546 = vmatprep.subr.mxu0 0.0
  %547 = vmatpush1.msra.mxu0 0.0
  %548 = vmatprep.subr.mxu0 0.0
  %549 = vmatpush1.msra.mxu0 0.0
  %550 = vmatprep.subr.mxu0 0.0
  %551 = vmatpush1.msra.mxu0 0.0
  %552 = vmatprep.subr.mxu0 0.0
  %553 = vmatpush1.msra.mxu0 %v526
  %554 = vmatprep.subr.mxu0 0.0
  %555 = vmatpush1.msra.mxu0 %v525
  %556 = vmatprep.subr.mxu0 0.0
  %557 = vmatpush1.msra.mxu0 %v524
  %558 = vmatprep.subr.mxu0 0.0
  %559 = vmatpush1.msra.mxu0 %v523
  %560 = vmatprep.subr.mxu0 0.0
  %561 = vmatpush1.msra.mxu0 %v522
  %562 = vmatprep.subr.mxu0 0.0
  %563 = vmatpush1.msra.mxu0 %v521
  %564 = vmatprep.subr.mxu0 0.0
  %565 = vmatpush1.msra.mxu0 %v520
  %566 = vmatprep.subr.mxu0 0.0
  %567 = vmatpush1.msra.mxu0 %v519
  %568 = vmatprep.subr.mxu0 0.0
  %569 = vmatpush2.msra.mxu0 0.0
  %570 = vmatprep.subr.mxu0 0.0
  %571 = vmatpush2.msra.mxu0 0.0
  %572 = vmatprep.subr.mxu0 0.0
  %573 = vmatpush2.msra.mxu0 0.0
  %574 = vmatprep.subr.mxu0 0.0
  %575 = vmatpush2.msra.mxu0 0.0
  %576 = vmatprep.subr.mxu0 0.0
  %577 = vmatpush2.msra.mxu0 0.0
  %578 = vmatprep.subr.mxu0 0.0
  %579 = vmatpush2.msra.mxu0 0.0
  %580 = vmatprep.subr.mxu0 0.0
  %581 = vmatpush2.msra.mxu0 0.0
  %582 = vmatprep.subr.mxu0 0.0
  %583 = vmatpush2.msra.mxu0 0.0
  %584 = vmatprep.subr.mxu0 0.0
  %585 = vmatpush2.msra.mxu0 0.0
  %586 = vmatprep.subr.mxu0 0.0
  %587 = vmatpush2.msra.mxu0 0.0
  %588 = vmatprep.subr.mxu0 0.0
  %589 = vmatpush2.msra.mxu0 0.0
  %590 = vmatprep.subr.mxu0 0.0
  %591 = vmatpush2.msra.mxu0 0.0
  %592 = vmatprep.subr.mxu0 0.0
  %593 = vmatpush2.msra.mxu0 0.0
  %594 = vmatprep.subr.mxu0 0.0
  %595 = vmatpush2.msra.mxu0 0.0
  %596 = vmatprep.subr.mxu0 0.0
  %597 = vmatpush2.msra.mxu0 0.0
  %598 = vmatprep.subr.mxu0 0.0
  %599 = vmatpush2.msra.mxu0 0.0
  %600 = vmatprep.mubr.f32.mxu0 0.0
  %601 = vmatmul.mubr.f32.gmra.mxu0 %v534
  %v602 = vpop.f32.mrf.mxu0
  %v603 = vadd.f32 %v530, %v602
  %v604 = vpop.f32.mrf.mxu0
  %605 = vdwg.mxu0
  %v606 = vtanh.pop %v603
  %v607 = vmul.f32 %v317, %v606
  %v608 = vlaneseq
  %v609 = vshrl.u32 %v608, 7
  %v610 = vsub.s32 4, %v609
  %v611 = vrot.slane %v17, %v610
  %v612 = vmul.f32 %v607, %v611
  %vm613 = vcmask 517120
  %v614 = vsel %vm613, %v612, 0.0
  %615 = vadd.xlane.f32.xlu0 %v614
  %v616 = vpop.xlane.xlu0 %615
  %v617 = vlaneseq
  %v618 = vshrl.u32 %v617, 7
  %v619 = vsub.s32 5, %v618
  %v620 = vrot.slane %v17, %v619
  %v621 = vadd.f32 %v616, %v620
  %v622 = vmul.f32 %v621, 0.5
  %v623 = vtanh.pop %v622
  %v624 = vadd.f32 %v623, 1.0
  %v625 = vmul.f32 %v624, 0.5
  %vm626 = vcmask 1024
  %627 = vst.msk [vmem:[%s4] sm:$0x3] %vm626, %v625
  // Predicated region
  $region18: #{matcher_forward.1} parent=0 // pred_check
    _
  $region19: #{matcher_forward.1} parent=0 // pred_check_branch
    %629 = sbr.rel (0) target = $region21
  $region20: #{matcher_forward.1} parent=0 // pred_region
    _
  $region21: #{matcher_forward.1} parent=0 // pred_fallthru
    _
  // Predicated region
  $region22: #{matcher_forward.1} parent=0 // pred_check
    _
  $region23: #{matcher_forward.1} parent=0 // pred_check_branch
    %631 = sbr.rel (0) target = $region25
  $region24: #{matcher_forward.1} parent=0 // pred_region
    _
  $region25: #{matcher_forward.1} parent=0 // pred_fallthru
    _

</llo_original>
